<compile_context>
chip_gen: v5e
topology: v5e:2x2
jax: 0.10.0
libtpu: 0.0.40
codegen_flags: <defaults>
</compile_context>

<pallas_src>
import functools

import jax
import jax.numpy as jnp
from jax.experimental import pallas as pl
from jax.experimental.pallas import tpu as pltpu

# Largest row tile.  1024x768 f32 = 3 MiB per buffer (6 MiB double-buffered).
_TB_MAX = 1024
# Number of partials produced for large inputs (leading "parallel" grid axis;
# uses both TensorCores on v7x, runs sequentially on v5e/v6e).
_NUM_CORES = 2


def _neg_fill_for(dtype):
    """Most-negative finite value of `dtype` (max identity / mask fill)."""
    if jnp.issubdtype(dtype, jnp.floating):
        return float(jnp.finfo(dtype).min)
    return int(jnp.iinfo(dtype).min)


# ----------------------------------------------------------------------------
# Kernels
# ----------------------------------------------------------------------------
def _single_tile_kernel(*refs, need_sum, need_max):
    """N <= _TB_MAX: one full-array block, direct reduce, no masking/scratch."""
    emb_ref = refs[0]
    pos = 1
    if need_sum:
        sum_out = refs[pos]; pos += 1
    if need_max:
        max_out = refs[pos]; pos += 1

    x = emb_ref[...]                                              # [N, D]
    if need_sum:
        sum_out[...] = jnp.sum(x.astype(jnp.float32), axis=0, keepdims=True)
    if need_max:
        # max is exact in the input dtype; cast once on the way out.
        max_out[...] = jnp.max(x, axis=0, keepdims=True).astype(jnp.float32)


def _multi_tile_kernel(*refs, n_rows, tb, tiles_per_core,
                       need_sum, need_max, mask_needed):
    """N > _TB_MAX: grid = (cores, tiles_per_core); carried VMEM accumulators."""
    emb_ref = refs[0]
    pos = 1
    if need_sum:
        sum_out = refs[pos]; pos += 1
    if need_max:
        max_out = refs[pos]; pos += 1
    if need_sum:
        sum_acc = refs[pos]; pos += 1
    if need_max:
        max_acc = refs[pos]; pos += 1

    c = pl.program_id(0)
    i = pl.program_id(1)
    tile_id = c * tiles_per_core + i          # logical (unclamped) tile index
    D = emb_ref.shape[-1]
    neg_fill = _neg_fill_for(emb_ref.dtype) if need_max else None

    @pl.when(i == 0)
    def _init():
        if need_sum:
            sum_acc[...] = jnp.zeros(sum_acc.shape, sum_acc.dtype)
        if need_max:
            max_acc[...] = jnp.full(max_acc.shape, neg_fill, max_acc.dtype)

    x = emb_ref[...]                                              # [tb, D]

    def _accumulate(x_sum, x_max):
        if need_sum:
            sum_acc[...] = sum_acc[...] + jnp.sum(
                x_sum.astype(jnp.float32), axis=0, keepdims=True)
        if need_max:
            max_acc[...] = jnp.maximum(
                max_acc[...], jnp.max(x_max, axis=0, keepdims=True))

    if not mask_needed:
        # Every grid step maps to a distinct, fully-populated tile: no iota,
        # no compare, no selects on the hot path.
        _accumulate(x, x)
    else:
        n_full = n_rows // tb                 # tiles strictly below are full

        @pl.when(tile_id < n_full)
        def _full_tile():
            _accumulate(x, x)

        @pl.when(tile_id >= n_full)           # partial last tile / overflow tile
        def _partial_tile():
            row = jax.lax.broadcasted_iota(jnp.int32, (tb, 1), 0) + tile_id * tb
            valid = row < n_rows
            xs = jnp.where(valid, x, jnp.zeros((), x.dtype)) if need_sum else x
            xm = (jnp.where(valid, x, jnp.full((), neg_fill, x.dtype))
                  if need_max else x)
            _accumulate(xs, xm)

    @pl.when(i == tiles_per_core - 1)
    def _finalize():
        # Output block is (1, 8, D) so its tiled dims stay (8, 128)-legal; the
        # wrapper only reads sublane row 0.
        if need_sum:
            sum_out[0] = jnp.broadcast_to(sum_acc[...], (8, D))
        if need_max:
            max_out[0] = jnp.broadcast_to(max_acc[...].astype(jnp.float32), (8, D))


# ----------------------------------------------------------------------------
# pallas_call wrappers
# ----------------------------------------------------------------------------
def _reduce_partials(embeddings, need_sum, need_max, D):
    """Run the Pallas reduction; returns dict with 'sum'/'max' partials [C, D] f32."""
    n = embeddings.shape[0]
    n_out = int(need_sum) + int(need_max)

    if n <= _TB_MAX:
        # Single full-array block (legal for any n) — no pad, no mask.
        out_shape = tuple(jax.ShapeDtypeStruct((1, D), jnp.float32)
                          for _ in range(n_out))
        out_specs = tuple(pl.BlockSpec((1, D), lambda i: (0, 0))
                          for _ in range(n_out))
        res = pl.pallas_call(
            functools.partial(_single_tile_kernel,
                              need_sum=need_sum, need_max=need_max),
            out_shape=out_shape if n_out > 1 else out_shape[0],
            grid=(1,),
            in_specs=[pl.BlockSpec((n, D), lambda i: (0, 0))],
            out_specs=out_specs if n_out > 1 else out_specs[0],
            compiler_params=pltpu.CompilerParams(
                dimension_semantics=("arbitrary",)),
        )(embeddings)
        parts = tuple(res) if n_out > 1 else (res,)          # each (1, D)
    else:
        tb = _TB_MAX
        n_tiles = pl.cdiv(n, tb)
        num_cores = _NUM_CORES
        tiles_per_core = pl.cdiv(n_tiles, num_cores)
        # Mask only when a partial or overflow tile exists.
        mask_needed = (n % tb != 0) or (num_cores * tiles_per_core != n_tiles)

        def emb_map(c, i):
            # Clamp so padded "overflow" grid steps re-read the last real tile;
            # their rows are fully masked out in-kernel.
            return (jnp.minimum(c * tiles_per_core + i, n_tiles - 1), 0)

        out_shape = tuple(jax.ShapeDtypeStruct((num_cores, 8, D), jnp.float32)
                          for _ in range(n_out))
        out_specs = tuple(pl.BlockSpec((1, 8, D), lambda c, i: (c, 0, 0))
                          for _ in range(n_out))
        scratch = []
        if need_sum:
            scratch.append(pltpu.VMEM((1, D), jnp.float32))
        if need_max:
            scratch.append(pltpu.VMEM((1, D), embeddings.dtype))  # bf16-friendly

        res = pl.pallas_call(
            functools.partial(_multi_tile_kernel, n_rows=n, tb=tb,
                              tiles_per_core=tiles_per_core,
                              need_sum=need_sum, need_max=need_max,
                              mask_needed=mask_needed),
            out_shape=out_shape if n_out > 1 else out_shape[0],
            grid=(num_cores, tiles_per_core),
            in_specs=[pl.BlockSpec((tb, D), emb_map)],
            out_specs=out_specs if n_out > 1 else out_specs[0],
            scratch_shapes=scratch,
            compiler_params=pltpu.CompilerParams(
                dimension_semantics=("parallel", "arbitrary")),
        )(embeddings)
        parts = tuple(res) if n_out > 1 else (res,)
        parts = tuple(p[:, 0, :] for p in parts)              # (num_cores, D)

    out = {}
    idx = 0
    if need_sum:
        out["sum"] = parts[idx]; idx += 1
    if need_max:
        out["max"] = parts[idx]; idx += 1
    return out


def make_aggregator(aggregation_method="mean", embedding_layer_size=768,
                    attn_weight=None, attn_bias=None):
    """Returns a jitted forward(embeddings[N, D]) -> [D] matching ImageAggregator."""
    D = embedding_layer_size
    mode = (aggregation_method
            if aggregation_method in ("mean", "sum", "max", "attention")
            else "mean")
    need_sum = mode in ("mean", "sum", "attention")
    need_max = mode in ("max", "attention")

    if mode == "attention":
        w = jnp.asarray(attn_weight, jnp.float32)     # [3, 3*D]
        b = jnp.asarray(attn_bias, jnp.float32)       # [3]
    else:
        w = b = None

    @jax.jit
    def forward(embeddings):
        n, d = embeddings.shape
        assert d == D, f"expected embedding dim {D}, got {d}"

        parts = _reduce_partials(embeddings, need_sum, need_max, D)

        if mode == "sum":
            res = jnp.sum(parts["sum"], axis=0)
        elif mode == "max":
            res = jnp.max(parts["max"], axis=0)
        elif mode == "attention":
            sum_a = jnp.sum(parts["sum"], axis=0)
            max_a = jnp.max(parts["max"], axis=0)
            mean_a = sum_a * (1.0 / n)
            cat = jnp.concatenate([mean_a, sum_a, max_a], axis=0)   # [3*D]
            scores = jax.nn.softmax(w @ cat + b, axis=0)            # [3]
            res = scores[0] * mean_a + scores[1] * sum_a + scores[2] * max_a
        else:  # "mean" and the torch module's fallback else-branch
            res = jnp.sum(parts["sum"], axis=0) * (1.0 / n)
        return res.astype(embeddings.dtype)

    return forward


# ----------------------------------------------------------------------------
# Pure-JAX reference (mirrors the PyTorch ImageAggregator.forward)
# ----------------------------------------------------------------------------
def reference_forward(embeddings, mode, attn_weight=None, attn_bias=None):
    if mode == "sum":
        return embeddings.sum(axis=0)
    if mode == "max":
        return embeddings.max(axis=0)
    if mode == "attention":
        mean_a = embeddings.mean(axis=0)
        sum_a = embeddings.sum(axis=0)
        max_a = embeddings.max(axis=0)
        cat = jnp.concatenate([mean_a, sum_a, max_a], axis=0)
        scores = jax.nn.softmax(attn_weight @ cat + attn_bias, axis=0)
        return scores[0] * mean_a + scores[1] * sum_a + scores[2] * max_a
    return embeddings.mean(axis=0)


if __name__ == "__main__":
    key = jax.random.PRNGKey(0)
    k1, k2, k3, kw, kb = jax.random.split(key, 5)

    D = 768  # embedding_layer_size from the module
    attn_w = jax.random.normal(kw, (3, 3 * D), jnp.float32) * 0.01
    attn_b = jax.random.normal(kb, (3,), jnp.float32) * 0.01

    cases = [
        # tiny N: single full-array block, no pad, no mask
        jax.random.normal(k1, (12, D), jnp.float32),
        # multi-tile: 3 tiles of 1024 on a 2x2 grid, masked partial + overflow tile
        jax.random.normal(k2, (2500, D), jnp.float32),
        # multi-tile: exactly divisible, unmasked fast path, one tile per core
        jax.random.normal(k3, (2048, D), jnp.float32),
    ]

    for ci, emb in enumerate(cases):
        modes = ("mean", "sum", "max", "attention") if ci < 2 else ("mean", "max")
        for mode in modes:
            fwd = make_aggregator(
                mode, D,
                attn_weight=attn_w if mode == "attention" else None,
                attn_bias=attn_b if mode == "attention" else None)
            out = jax.block_until_ready(fwd(emb))
            ref = reference_forward(emb, mode, attn_w, attn_b)
            assert out.shape == (D,), (mode, out.shape)
            err = float(jnp.max(jnp.abs(out - ref)))
            assert jnp.allclose(out, ref, atol=2e-3, rtol=2e-3), (mode, emb.shape, err)

    # bf16 inputs (review item: half the HBM traffic); kernel accumulates the
    # sum path in f32, so compare against an f32 reference on the same values.
    emb_bf16 = jax.random.normal(k2, (2500, D), jnp.float32).astype(jnp.bfloat16)
    for mode in ("mean", "attention"):
        fwd = make_aggregator(
            mode, D,
            attn_weight=attn_w if mode == "attention" else None,
            attn_bias=attn_b if mode == "attention" else None)
        out = jax.block_until_ready(fwd(emb_bf16))
        ref = reference_forward(emb_bf16.astype(jnp.float32), mode, attn_w, attn_b)
        assert out.shape == (D,), (mode, out.shape)
        assert jnp.allclose(out.astype(jnp.float32), ref, atol=5e-1, rtol=5e-2), mode

    print("KERNEL_OK")
</pallas_src>

<mosaic_0001>
module attributes {stable_mosaic.version = 11 : i64} {
  func.func @_single_tile_kernel(%arg0: i32, %arg1: memref<12x768xf32, #tpu.memory_space<vmem>>, %arg2: memref<1x768xf32, #tpu.memory_space<vmem>>) attributes {dimension_semantics = [#tpu.dimension_semantics<arbitrary>], iteration_bounds = array<i64: 1>, scalar_prefetch = 0 : i64, scratch_operands = 0 : i64, tpu.core_type = #tpu.core_type<tc>, window_params = [{pipeline_mode = #tpu.pipeline_mode<synchronous>, transform_indices = @transform_0, window_bounds = array<i64: 12, 768>}, {pipeline_mode = #tpu.pipeline_mode<synchronous>, transform_indices = @transform_1, window_bounds = array<i64: 1, 768>}]} {
    %c0 = arith.constant 0 : index
    %c0_0 = arith.constant 0 : index
    %0 = vector.load %arg1[%c0, %c0_0] : memref<12x768xf32, #tpu.memory_space<vmem>>, vector<12x768xf32>
    %cst = arith.constant dense<0.000000e+00> : vector<768xf32>
    %1 = vector.multi_reduction <add>, %0, %cst [0] : vector<12x768xf32> to vector<768xf32>
    %2 = vector.shape_cast %1 : vector<768xf32> to vector<1x768xf32>
    %c0_1 = arith.constant 0 : index
    %c0_2 = arith.constant 0 : index
    %3 = vector.load %arg2[%c0_1, %c0_2] : memref<1x768xf32, #tpu.memory_space<vmem>>, vector<1x768xf32>
    tpu.vector_store %arg2[%c0_1, %c0_2], %2 {strides = array<i32>} : memref<1x768xf32, #tpu.memory_space<vmem>>, vector<1x768xf32>,
    return
  }
  func.func @transform_0(%arg0: i32) -> (i32, i32) {
    %c0_i32 = arith.constant 0 : i32
    %c0_i32_0 = arith.constant 0 : i32
    %c0_i32_1 = arith.constant 0 : i32
    return %c0_i32, %c0_i32_0 : i32, i32
  }
  func.func @transform_1(%arg0: i32) -> (i32, i32) {
    %c0_i32 = arith.constant 0 : i32
    %c0_i32_0 = arith.constant 0 : i32
    %c0_i32_1 = arith.constant 0 : i32
    return %c0_i32, %c0_i32_0 : i32, i32
  }
}

</mosaic_0001>

<llo_original>
// kernel: forward.1
$region0: #{forward.1}
  #allocation0 [shape = 'u32[]', space=smem, size = 0x4, offset = 0x4, fixed_abs, tag = 'smem constant byte address 0x4 - core index']
  #allocation1 [shape = 'u32[72,128]{1,0:T(1,128)}', space=vmem, size = 0x9000, scoped, tag = 'internal scratch']
  %s0 = inlined_call_operand.hbm [shape: f32[12,768], index: 0, kind: input, shape index: {}]
  %s1 = inlined_call_operand.vmem [shape: f32[1,768], index: 1, kind: output, shape index: {}]
  %s2 = sld [smem:[#allocation0]]
  $region18: #{forward.1} parent=0
    _
  %s4 = ssub.s32 1, %s2
  %s5 = scalar_select 0, %s4, %s2
  $region1: #{forward.1} parent=0
    #allocation2 [shape = 'u8[49152]{0}', space=vmem, size = 0xc000, scoped, tag = 'input window, operand 0, single buffered']
    #allocation3 [shape = 's32[1]{0}', space=sflag, size = 0x4, scoped, tag = 'scoped memory for forward.1']
    %6 = vsyncpa [#allocation3], 0
    // Predicated region
    $region2: #{forward.1} parent=1 // pred_check
      _
    $region3: #{forward.1} parent=1 // pred_check_branch
      %8 = sbr.rel (0) target = $region5
    $region4: #{forward.1} parent=1 // pred_region
      %10 = vsyncadd [#allocation3], 0
      %s11 = sshll.u32 %s0, 4
      %s12 = int_to_ptr.hbm [resolvable:$true] %s11
      %s13 = sshll.u32 [#allocation2], 4
      %s14 = int_to_ptr.vmem [resolvable:$true] %s13
      %19 = dma.hbm_to_vmem [thread:$0]  %s12, 1536, %s14, [#allocation3], 768, 768, 48
    $region5: #{forward.1} parent=1 // pred_fallthru
      _
    // Predicated region
    $region6: #{forward.1} parent=1 // pred_check
      _
    $region7: #{forward.1} parent=1 // pred_check_branch
      %21 = sbr.rel (0) target = $region9
    $region8: #{forward.1} parent=1 // pred_region
      %23 = dma.done [#allocation3], 1536
    $region9: #{forward.1} parent=1 // pred_fallthru
      _
    %v24 = vld [vmem:[#allocation2] sm:$0xff]
    %v25 = vld [vmem:[#allocation2 + $0x8] sm:$0xff]
    %v26 = vld [vmem:[#allocation2 + $0x10] sm:$0xff]
    %v27 = vld [vmem:[#allocation2 + $0x18] sm:$0xff]
    %v28 = vld [vmem:[#allocation2 + $0x20] sm:$0xff]
    %v29 = vld [vmem:[#allocation2 + $0x28] sm:$0xff]
    %v30 = vld [vmem:[#allocation2 + $0x30] sm:$0xf]
    %v31 = vld [vmem:[#allocation2 + $0x38] sm:$0xf]
    %v32 = vld [vmem:[#allocation2 + $0x40] sm:$0xf]
    %v33 = vld [vmem:[#allocation2 + $0x48] sm:$0xf]
    %v34 = vld [vmem:[#allocation2 + $0x50] sm:$0xf]
    %v35 = vld [vmem:[#allocation2 + $0x58] sm:$0xf]
    %vm36 = vcmask 1043456
    %v37 = vsel %vm36, %v30, 0.0
    %v38 = vadd.f32 %v24, %v37
    %v39 = vrot.slane %v38, 4
    %v40 = vadd.f32 %v38, %v39
    %v41 = vrot.slane %v40, 2
    %v42 = vadd.f32 %v40, %v41
    %v43 = vrot.slane %v42, 1
    %v44 = vadd.f32 %v42, %v43
    %v45 = vsel %vm36, %v31, 0.0
    %v46 = vadd.f32 %v25, %v45
    %v47 = vrot.slane %v46, 4
    %v48 = vadd.f32 %v46, %v47
    %v49 = vrot.slane %v48, 2
    %v50 = vadd.f32 %v48, %v49
    %v51 = vrot.slane %v50, 1
    %v52 = vadd.f32 %v50, %v51
    %v53 = vsel %vm36, %v32, 0.0
    %v54 = vadd.f32 %v26, %v53
    %v55 = vrot.slane %v54, 4
    %v56 = vadd.f32 %v54, %v55
    %v57 = vrot.slane %v56, 2
    %v58 = vadd.f32 %v56, %v57
    %v59 = vrot.slane %v58, 1
    %v60 = vadd.f32 %v58, %v59
    %v61 = vsel %vm36, %v33, 0.0
    %v62 = vadd.f32 %v27, %v61
    %v63 = vrot.slane %v62, 4
    %v64 = vadd.f32 %v62, %v63
    %v65 = vrot.slane %v64, 2
    %v66 = vadd.f32 %v64, %v65
    %v67 = vrot.slane %v66, 1
    %v68 = vadd.f32 %v66, %v67
    %v69 = vsel %vm36, %v34, 0.0
    %v70 = vadd.f32 %v28, %v69
    %v71 = vrot.slane %v70, 4
    %v72 = vadd.f32 %v70, %v71
    %v73 = vrot.slane %v72, 2
    %v74 = vadd.f32 %v72, %v73
    %v75 = vrot.slane %v74, 1
    %v76 = vadd.f32 %v74, %v75
    %v77 = vsel %vm36, %v35, 0.0
    %v78 = vadd.f32 %v29, %v77
    %v79 = vrot.slane %v78, 4
    %v80 = vadd.f32 %v78, %v79
    %v81 = vrot.slane %v80, 2
    %v82 = vadd.f32 %v80, %v81
    %v83 = vrot.slane %v82, 1
    %v84 = vadd.f32 %v82, %v83
    %v91 = vrot.slane %v52, 7
    %v92 = vrot.slane %v60, 6
    %v93 = vrot.slane %v68, 5
    %v94 = vrot.slane %v76, 4
    %v95 = vrot.slane %v84, 3
    %vm96 = vcmask 1040384
    %v97 = vsel %vm96, %v44, %v91
    %vm98 = vcmask 1041408
    %v99 = vsel %vm98, %v97, %v92
    %vm100 = vcmask 1043459
    %v101 = vsel %vm100, %v93, %v94
    %vm102 = vcmask 1044483
    %v103 = vsel %vm102, %v101, %v95
    %vm104 = vcmask 1042432
    %v105 = vsel %vm104, %v99, %v103
    %v107 = vlaneseq
    %vm108 = vcmp.ge.s32.totalorder %v107, 0
    %vm109 = vcmp.lt.s32.totalorder %v107, 768
    %vm110 = vmand %vm108, %vm109
    %111 = vst.msk [vmem:[%s1] sm:$0x3f] %vm110, %v105
    // Predicated region
    $region10: #{forward.1} parent=1 // pred_check
      _
    $region11: #{forward.1} parent=1 // pred_check_branch
      %113 = sbr.rel (0) target = $region13
    $region12: #{forward.1} parent=1 // pred_region
      _
    $region13: #{forward.1} parent=1 // pred_fallthru
      _
    // Predicated region
    $region14: #{forward.1} parent=1 // pred_check
      _
    $region15: #{forward.1} parent=1 // pred_check_branch
      %115 = sbr.rel (0) target = $region17
    $region16: #{forward.1} parent=1 // pred_region
      _
    $region17: #{forward.1} parent=1 // pred_fallthru
      _
    %116 = vsyncpa [#allocation3], 1

</llo_original>
